<compile_context>
chip_gen: v5e
topology: v5e:2x2
jax: 0.10.0
libtpu: 0.0.40
codegen_flags: <defaults>
</compile_context>

<pallas_src>
import functools

import jax
import jax.numpy as jnp
from jax.experimental import pallas as pl


def _fused_gat_kernel(x_ref, mask1_ref, adj2_ref, w1_ref, asrc_exp_ref,
                      adst_exp_ref, dsel_ref, bsum_ref, efh_ref, blkmask_ref,
                      b1_ref, w2_ref, asrc2_ref, adst2_ref, b2_ref, out_ref,
                      *, heads):
    """2-layer GAT forward (all heads lane-packed + ELU + 2nd conv), fused."""
    f32 = jnp.float32
    x = x_ref[...]                                                    # [N, Fin]
    n = x.shape[0]

    # ---- layer 1: projection for all heads, one lane-dense matmul ----------
    xw1 = jnp.dot(x, w1_ref[...], preferred_element_type=f32)        # [N, H*Fh]

    # Lane-packed attention logits: e_all[i, h*N + j] = a_dst[i,h] + a_src[j,h].
    #  * dst_cols[i, h*N+j] = a_dst[i,h]   via xw1 @ adst_exp  (host-built)
    #  * src_cols[j, h*N+j']= a_src[j,h]   via xw1 @ asrc_exp
    #  * src_pack[i, h*N+j] = a_src[j,h]   via ones @ (src_cols * Dsel)
    #    (MXU does the sublane->lane "transpose"; no XLU relayout needed)
    dst_cols = jnp.dot(xw1, adst_exp_ref[...], preferred_element_type=f32)   # [N, H*N]
    src_cols = jnp.dot(xw1, asrc_exp_ref[...], preferred_element_type=f32)   # [N, H*N]
    ones_nn = jnp.ones((n, n), f32)
    src_pack = jnp.dot(ones_nn, src_cols * dsel_ref[...],
                       preferred_element_type=f32)                           # [N, H*N]
    e_all = dst_cols + src_pack

    # LeakyReLU(0.2) + additive edge mask (0 / -1e30), full [N, H*N] width.
    e_all = jnp.where(e_all > 0, e_all, 0.2 * e_all) + mask1_ref[...]

    # One global per-row max (self-loops keep every row finite).  The shift is
    # constant within each row/head block, so the per-head softmax is exact;
    # masked lanes underflow to exactly 0.
    m = jnp.max(e_all, axis=-1, keepdims=True)
    p_all = jnp.exp(e_all - m)                                        # [N, H*N]

    # Per-head softmax denominators via MXU segment-sum (no XLU segment ops).
    denom = jnp.dot(p_all, bsum_ref[...], preferred_element_type=f32)  # [N, H]
    inv = pl.reciprocal(jnp.maximum(denom, jnp.float32(1e-30)), approx=True)
    inv_cols = jnp.dot(inv, efh_ref[...], preferred_element_type=f32)  # [N, H*Fh]

    # All-head aggregation as ONE K=128 MXU matmul.  XW_big is the block-diag
    # replication of xw1 (row block h keeps only column block h), so the result
    # lands directly in concat layout [N, H*Fh].
    xw_big = jnp.concatenate([xw1] * heads, axis=0) * blkmask_ref[...]  # [H*N, H*Fh]
    agg = jnp.dot(p_all, xw_big, preferred_element_type=f32) * inv_cols + b1_ref[...]
    h1 = jnp.where(agg > 0, agg, jnp.exp(agg) - 1.0)                  # ELU, full width

    # ---- layer 2: single head, concat=False ---------------------------------
    xw2 = jnp.dot(h1, w2_ref[...], preferred_element_type=f32)        # [N, Fout]
    a_src2 = jnp.dot(xw2, asrc2_ref[...], preferred_element_type=f32)  # [N, 1]
    a_dst2 = jnp.dot(xw2, adst2_ref[...], preferred_element_type=f32)  # [N, 1]
    e2 = a_dst2 + jnp.transpose(a_src2)                               # [N, N] (only XLU transpose)
    e2 = jnp.where(e2 > 0, e2, 0.2 * e2) + adj2_ref[...]
    m2 = jnp.max(e2, axis=-1, keepdims=True)
    p2 = jnp.exp(e2 - m2)
    inv2 = pl.reciprocal(
        jnp.maximum(jnp.sum(p2, axis=-1, keepdims=True), jnp.float32(1e-30)),
        approx=True)
    out_ref[...] = jnp.dot(p2 * inv2, xw2, preferred_element_type=f32) + b2_ref[...]


def graph_gat_forward(x, edge_index, params, *, heads, hidden_dim, out_dim):
    """GraphGAT forward (eval mode), everything fused in one pallas_call."""
    N = x.shape[0]
    H, Fh = heads, hidden_dim
    f32 = jnp.float32

    # Adjacency with self-loops (GATConv default) via ONE scatter:
    # adj[i, j] = 1 iff edge j -> i (or i == j).
    loops = jnp.arange(N, dtype=edge_index.dtype)
    src = jnp.concatenate([edge_index[0], loops])
    dst = jnp.concatenate([edge_index[1], loops])
    adj = jnp.zeros((N, N), f32).at[dst, src].set(1.0)
    adj_bias = jnp.where(adj > 0, jnp.float32(0.0), jnp.float32(-1e30))   # [N, N]
    mask1 = jnp.tile(adj_bias, (1, H))                                     # [N, H*N]

    # Host-side constants (head packing / segment-sum / block-diag selectors).
    eyeH = jnp.eye(H, dtype=f32)
    asrc_bd = (params["asrc1"][:, :, None] * eyeH[:, None, :]).reshape(H * Fh, H)
    adst_bd = (params["adst1"][:, :, None] * eyeH[:, None, :]).reshape(H * Fh, H)
    e_exp = jnp.kron(eyeH, jnp.ones((1, N), f32))          # [H, H*N], 1 iff head(c)==h
    asrc_exp = asrc_bd @ e_exp                              # [H*Fh, H*N]
    adst_exp = adst_bd @ e_exp                              # [H*Fh, H*N]
    dsel = jnp.tile(jnp.eye(N, dtype=f32), (1, H))          # [N, H*N], 1 iff j(c)==row
    bsum = jnp.transpose(e_exp)                             # [H*N, H] segment-sum
    efh = jnp.kron(eyeH, jnp.ones((1, Fh), f32))            # [H, H*Fh] head->cols expand
    blkmask = jnp.kron(eyeH, jnp.ones((N, Fh), f32))        # [H*N, H*Fh] block-diag mask

    kernel = functools.partial(_fused_gat_kernel, heads=H)
    # Single invocation, whole (tiny) arrays resident in VMEM (default specs).
    return pl.pallas_call(
        kernel,
        out_shape=jax.ShapeDtypeStruct((N, out_dim), jnp.float32),
    )(
        x, mask1, adj_bias,
        params["W1"], asrc_exp, adst_exp, dsel, bsum, efh, blkmask,
        params["b1"].reshape(1, H * Fh),
        params["W2"],
        params["asrc2"].reshape(out_dim, 1),
        params["adst2"].reshape(out_dim, 1),
        params["b2"].reshape(1, out_dim),
    )


def _gat_reference(x, adj, params, *, heads, hidden_dim, out_dim):
    """Pure-JAX dense GATConv reference (PyG semantics, eval mode)."""
    def conv(xin, W, att_src, att_dst, bias, H, C, concat):
        N = xin.shape[0]
        xw = (xin @ W).reshape(N, H, C)
        a_src = jnp.einsum("nhc,hc->nh", xw, att_src)
        a_dst = jnp.einsum("nhc,hc->nh", xw, att_dst)
        e = a_dst[:, None, :] + a_src[None, :, :]        # e[i, j, h]
        e = jnp.where(e > 0, e, 0.2 * e)
        e = jnp.where(adj[:, :, None] > 0, e, -1e30)
        alpha = jax.nn.softmax(e, axis=1)                # softmax over sources j
        out = jnp.einsum("ijh,jhc->ihc", alpha, xw)
        if concat:
            return out.reshape(N, H * C) + bias
        return out.mean(axis=1) + bias

    h = conv(x, params["W1"], params["asrc1"], params["adst1"], params["b1"],
             heads, hidden_dim, True)
    h = jax.nn.elu(h)
    return conv(h, params["W2"], params["asrc2"], params["adst2"], params["b2"],
                1, out_dim, False)


if __name__ == "__main__":
    # Small shapes consistent with the module's forward.
    N, IN_DIM, HIDDEN, OUT_DIM, HEADS = 16, 16, 8, 4, 8

    key = jax.random.PRNGKey(0)
    ks = jax.random.split(key, 9)

    # Node features [num_nodes, in_dim]
    x = jax.random.normal(ks[0], (N, IN_DIM), jnp.float32)

    # Deterministic edge_index [2, num_edges]: bidirectional ring graph.
    idx = jnp.arange(N)
    src = jnp.concatenate([idx, (idx + 1) % N])
    dst = jnp.concatenate([(idx + 1) % N, idx])
    edge_index = jnp.stack([src, dst], axis=0)        # [2, 2N]

    params = {
        # gat1: in_dim -> hidden, heads=HEADS, concat=True
        "W1": 0.1 * jax.random.normal(ks[1], (IN_DIM, HEADS * HIDDEN), jnp.float32),
        "asrc1": 0.1 * jax.random.normal(ks[2], (HEADS, HIDDEN), jnp.float32),
        "adst1": 0.1 * jax.random.normal(ks[3], (HEADS, HIDDEN), jnp.float32),
        "b1": 0.1 * jax.random.normal(ks[4], (HEADS * HIDDEN,), jnp.float32),
        # gat2: heads*hidden -> out_dim, heads=1, concat=False
        "W2": 0.1 * jax.random.normal(ks[5], (HEADS * HIDDEN, OUT_DIM), jnp.float32),
        "asrc2": 0.1 * jax.random.normal(ks[6], (1, OUT_DIM), jnp.float32),
        "adst2": 0.1 * jax.random.normal(ks[7], (1, OUT_DIM), jnp.float32),
        "b2": 0.1 * jax.random.normal(ks[8], (OUT_DIM,), jnp.float32),
    }

    fwd = jax.jit(lambda xx, ei, p: graph_gat_forward(
        xx, ei, p, heads=HEADS, hidden_dim=HIDDEN, out_dim=OUT_DIM))
    out = jax.block_until_ready(fwd(x, edge_index, params))

    assert out.shape == (N, OUT_DIM) and out.dtype == jnp.float32
    assert bool(jnp.isfinite(out).all())

    # Correctness vs pure-JAX dense GAT reference (loose tol: approx recip).
    adj_ref = jnp.zeros((N, N), jnp.float32).at[edge_index[1], edge_index[0]].set(1.0)
    adj_ref = adj_ref.at[jnp.arange(N), jnp.arange(N)].set(1.0)
    ref = _gat_reference(x, adj_ref, params,
                         heads=HEADS, hidden_dim=HIDDEN, out_dim=OUT_DIM)
    assert bool(jnp.allclose(out, ref, rtol=2e-2, atol=2e-2))

    print("KERNEL_OK")
</pallas_src>

<mosaic_0001>
module attributes {stable_mosaic.version = 11 : i64} {
  func.func @_fused_gat_kernel(%arg0: memref<16x16xf32, #tpu.memory_space<vmem>>, %arg1: memref<16x128xf32, #tpu.memory_space<vmem>>, %arg2: memref<16x16xf32, #tpu.memory_space<vmem>>, %arg3: memref<16x64xf32, #tpu.memory_space<vmem>>, %arg4: memref<64x128xf32, #tpu.memory_space<vmem>>, %arg5: memref<64x128xf32, #tpu.memory_space<vmem>>, %arg6: memref<16x128xf32, #tpu.memory_space<vmem>>, %arg7: memref<128x8xf32, #tpu.memory_space<vmem>>, %arg8: memref<8x64xf32, #tpu.memory_space<vmem>>, %arg9: memref<128x64xf32, #tpu.memory_space<vmem>>, %arg10: memref<1x64xf32, #tpu.memory_space<vmem>>, %arg11: memref<64x4xf32, #tpu.memory_space<vmem>>, %arg12: memref<4x1xf32, #tpu.memory_space<vmem>>, %arg13: memref<4x1xf32, #tpu.memory_space<vmem>>, %arg14: memref<1x4xf32, #tpu.memory_space<vmem>>, %arg15: memref<16x4xf32, #tpu.memory_space<vmem>>) attributes {dimension_semantics = [], scalar_prefetch = 0 : i64, scratch_operands = 0 : i64, tpu.core_type = #tpu.core_type<tc>} {
    %c0 = arith.constant 0 : index
    %c0_0 = arith.constant 0 : index
    %0 = vector.load %arg0[%c0, %c0_0] : memref<16x16xf32, #tpu.memory_space<vmem>>, vector<16x16xf32>
    %c0_1 = arith.constant 0 : index
    %c0_2 = arith.constant 0 : index
    %1 = vector.load %arg3[%c0_1, %c0_2] : memref<16x64xf32, #tpu.memory_space<vmem>>, vector<16x64xf32>
    %cst = arith.constant dense<0.000000e+00> : vector<16x64xf32>
    %2 = tpu.matmul %0, %1, %cst {dimension_numbers = #tpu.dot_dimension_numbers<[1], [0], [0], [1], [0, 0, 1, 1], [], []>} : vector<16x16xf32>, vector<16x64xf32>, vector<16x64xf32> -> vector<16x64xf32>
    %c0_3 = arith.constant 0 : index
    %c0_4 = arith.constant 0 : index
    %3 = vector.load %arg5[%c0_3, %c0_4] : memref<64x128xf32, #tpu.memory_space<vmem>>, vector<64x128xf32>
    %cst_5 = arith.constant dense<0.000000e+00> : vector<16x128xf32>
    %4 = tpu.matmul %2, %3, %cst_5 {dimension_numbers = #tpu.dot_dimension_numbers<[1], [0], [0], [1], [0, 0, 1, 1], [], []>} : vector<16x64xf32>, vector<64x128xf32>, vector<16x128xf32> -> vector<16x128xf32>
    %c0_6 = arith.constant 0 : index
    %c0_7 = arith.constant 0 : index
    %5 = vector.load %arg4[%c0_6, %c0_7] : memref<64x128xf32, #tpu.memory_space<vmem>>, vector<64x128xf32>
    %cst_8 = arith.constant dense<0.000000e+00> : vector<16x128xf32>
    %6 = tpu.matmul %2, %5, %cst_8 {dimension_numbers = #tpu.dot_dimension_numbers<[1], [0], [0], [1], [0, 0, 1, 1], [], []>} : vector<16x64xf32>, vector<64x128xf32>, vector<16x128xf32> -> vector<16x128xf32>
    %cst_9 = arith.constant 1.000000e+00 : f32
    %7 = vector.broadcast %cst_9 : f32 to vector<16x16xf32>
    %c0_10 = arith.constant 0 : index
    %c0_11 = arith.constant 0 : index
    %8 = vector.load %arg6[%c0_10, %c0_11] : memref<16x128xf32, #tpu.memory_space<vmem>>, vector<16x128xf32>
    %9 = arith.mulf %6, %8 : vector<16x128xf32>
    %cst_12 = arith.constant dense<0.000000e+00> : vector<16x128xf32>
    %10 = tpu.matmul %7, %9, %cst_12 {dimension_numbers = #tpu.dot_dimension_numbers<[1], [0], [0], [1], [0, 0, 1, 1], [], []>} : vector<16x16xf32>, vector<16x128xf32>, vector<16x128xf32> -> vector<16x128xf32>
    %11 = arith.addf %4, %10 : vector<16x128xf32>
    %cst_13 = arith.constant 0.000000e+00 : f32
    %12 = vector.broadcast %cst_13 : f32 to vector<16x128xf32>
    %13 = arith.cmpf ogt, %11, %12 : vector<16x128xf32>
    %cst_14 = arith.constant 2.000000e-01 : f32
    %14 = vector.broadcast %cst_14 : f32 to vector<16x128xf32>
    %15 = arith.mulf %14, %11 : vector<16x128xf32>
    %16 = arith.select %13, %11, %15 : vector<16x128xi1>, vector<16x128xf32>
    %c0_15 = arith.constant 0 : index
    %c0_16 = arith.constant 0 : index
    %17 = vector.load %arg1[%c0_15, %c0_16] : memref<16x128xf32, #tpu.memory_space<vmem>>, vector<16x128xf32>
    %18 = arith.addf %16, %17 : vector<16x128xf32>
    %cst_17 = arith.constant dense<0xFF800000> : vector<16xf32>
    %19 = vector.multi_reduction <maximumf>, %18, %cst_17 [1] : vector<16x128xf32> to vector<16xf32>
    %20 = vector.shape_cast %19 : vector<16xf32> to vector<16x1xf32>
    %21 = vector.broadcast %20 : vector<16x1xf32> to vector<16x128xf32>
    %22 = arith.subf %18, %21 : vector<16x128xf32>
    %23 = math.exp %22 : vector<16x128xf32>
    %c0_18 = arith.constant 0 : index
    %c0_19 = arith.constant 0 : index
    %24 = vector.load %arg7[%c0_18, %c0_19] : memref<128x8xf32, #tpu.memory_space<vmem>>, vector<128x8xf32>
    %cst_20 = arith.constant dense<0.000000e+00> : vector<16x8xf32>
    %25 = tpu.matmul %23, %24, %cst_20 {dimension_numbers = #tpu.dot_dimension_numbers<[1], [0], [0], [1], [0, 0, 1, 1], [], []>} : vector<16x128xf32>, vector<128x8xf32>, vector<16x8xf32> -> vector<16x8xf32>
    %cst_21 = arith.constant 1.000000e-30 : f32
    %26 = vector.broadcast %cst_21 : f32 to vector<16x8xf32>
    %27 = arith.maximumf %25, %26 : vector<16x8xf32>
    %28 = tpu.reciprocal %27 {approx = true} : vector<16x8xf32> -> vector<16x8xf32>
    %c0_22 = arith.constant 0 : index
    %c0_23 = arith.constant 0 : index
    %29 = vector.load %arg8[%c0_22, %c0_23] : memref<8x64xf32, #tpu.memory_space<vmem>>, vector<8x64xf32>
    %cst_24 = arith.constant dense<0.000000e+00> : vector<16x64xf32>
    %30 = tpu.matmul %28, %29, %cst_24 {dimension_numbers = #tpu.dot_dimension_numbers<[1], [0], [0], [1], [0, 0, 1, 1], [], []>} : vector<16x8xf32>, vector<8x64xf32>, vector<16x64xf32> -> vector<16x64xf32>
    %31 = tpu.concatenate %2, %2, %2, %2, %2, %2, %2, %2 in 0 : vector<16x64xf32>, vector<16x64xf32>, vector<16x64xf32>, vector<16x64xf32>, vector<16x64xf32>, vector<16x64xf32>, vector<16x64xf32>, vector<16x64xf32> -> vector<128x64xf32>
    %c0_25 = arith.constant 0 : index
    %c0_26 = arith.constant 0 : index
    %32 = vector.load %arg9[%c0_25, %c0_26] : memref<128x64xf32, #tpu.memory_space<vmem>>, vector<128x64xf32>
    %33 = arith.mulf %31, %32 : vector<128x64xf32>
    %cst_27 = arith.constant dense<0.000000e+00> : vector<16x64xf32>
    %34 = tpu.matmul %23, %33, %cst_27 {dimension_numbers = #tpu.dot_dimension_numbers<[1], [0], [0], [1], [0, 0, 1, 1], [], []>} : vector<16x128xf32>, vector<128x64xf32>, vector<16x64xf32> -> vector<16x64xf32>
    %35 = arith.mulf %34, %30 : vector<16x64xf32>
    %c0_28 = arith.constant 0 : index
    %c0_29 = arith.constant 0 : index
    %36 = vector.load %arg10[%c0_28, %c0_29] : memref<1x64xf32, #tpu.memory_space<vmem>>, vector<1x64xf32>
    %37 = vector.broadcast %36 : vector<1x64xf32> to vector<16x64xf32>
    %38 = arith.addf %35, %37 : vector<16x64xf32>
    %cst_30 = arith.constant 0.000000e+00 : f32
    %39 = vector.broadcast %cst_30 : f32 to vector<16x64xf32>
    %40 = arith.cmpf ogt, %38, %39 : vector<16x64xf32>
    %41 = math.exp %38 : vector<16x64xf32>
    %cst_31 = arith.constant 1.000000e+00 : f32
    %42 = vector.broadcast %cst_31 : f32 to vector<16x64xf32>
    %43 = arith.subf %41, %42 : vector<16x64xf32>
    %44 = arith.select %40, %38, %43 : vector<16x64xi1>, vector<16x64xf32>
    %c0_32 = arith.constant 0 : index
    %c0_33 = arith.constant 0 : index
    %45 = vector.load %arg11[%c0_32, %c0_33] : memref<64x4xf32, #tpu.memory_space<vmem>>, vector<64x4xf32>
    %cst_34 = arith.constant dense<0.000000e+00> : vector<16x4xf32>
    %46 = tpu.matmul %44, %45, %cst_34 {dimension_numbers = #tpu.dot_dimension_numbers<[1], [0], [0], [1], [0, 0, 1, 1], [], []>} : vector<16x64xf32>, vector<64x4xf32>, vector<16x4xf32> -> vector<16x4xf32>
    %c0_35 = arith.constant 0 : index
    %c0_36 = arith.constant 0 : index
    %47 = vector.load %arg12[%c0_35, %c0_36] : memref<4x1xf32, #tpu.memory_space<vmem>>, vector<4x1xf32>
    %cst_37 = arith.constant dense<0.000000e+00> : vector<16x1xf32>
    %48 = tpu.matmul %46, %47, %cst_37 {dimension_numbers = #tpu.dot_dimension_numbers<[1], [0], [0], [1], [0, 0, 1, 1], [], []>} : vector<16x4xf32>, vector<4x1xf32>, vector<16x1xf32> -> vector<16x1xf32>
    %c0_38 = arith.constant 0 : index
    %c0_39 = arith.constant 0 : index
    %49 = vector.load %arg13[%c0_38, %c0_39] : memref<4x1xf32, #tpu.memory_space<vmem>>, vector<4x1xf32>
    %cst_40 = arith.constant dense<0.000000e+00> : vector<16x1xf32>
    %50 = tpu.matmul %46, %49, %cst_40 {dimension_numbers = #tpu.dot_dimension_numbers<[1], [0], [0], [1], [0, 0, 1, 1], [], []>} : vector<16x4xf32>, vector<4x1xf32>, vector<16x1xf32> -> vector<16x1xf32>
    %51 = tpu.transpose %48, [1, 0] : vector<16x1xf32> -> vector<1x16xf32>
    %52 = vector.broadcast %50 : vector<16x1xf32> to vector<16x16xf32>
    %53 = vector.broadcast %51 : vector<1x16xf32> to vector<16x16xf32>
    %54 = arith.addf %52, %53 : vector<16x16xf32>
    %cst_41 = arith.constant 0.000000e+00 : f32
    %55 = vector.broadcast %cst_41 : f32 to vector<16x16xf32>
    %56 = arith.cmpf ogt, %54, %55 : vector<16x16xf32>
    %cst_42 = arith.constant 2.000000e-01 : f32
    %57 = vector.broadcast %cst_42 : f32 to vector<16x16xf32>
    %58 = arith.mulf %57, %54 : vector<16x16xf32>
    %59 = arith.select %56, %54, %58 : vector<16x16xi1>, vector<16x16xf32>
    %c0_43 = arith.constant 0 : index
    %c0_44 = arith.constant 0 : index
    %60 = vector.load %arg2[%c0_43, %c0_44] : memref<16x16xf32, #tpu.memory_space<vmem>>, vector<16x16xf32>
    %61 = arith.addf %59, %60 : vector<16x16xf32>
    %cst_45 = arith.constant dense<0xFF800000> : vector<16xf32>
    %62 = vector.multi_reduction <maximumf>, %61, %cst_45 [1] : vector<16x16xf32> to vector<16xf32>
    %63 = vector.shape_cast %62 : vector<16xf32> to vector<16x1xf32>
    %64 = vector.broadcast %63 : vector<16x1xf32> to vector<16x16xf32>
    %65 = arith.subf %61, %64 : vector<16x16xf32>
    %66 = math.exp %65 : vector<16x16xf32>
    %cst_46 = arith.constant dense<0.000000e+00> : vector<16xf32>
    %67 = vector.multi_reduction <add>, %66, %cst_46 [1] : vector<16x16xf32> to vector<16xf32>
    %68 = vector.shape_cast %67 : vector<16xf32> to vector<16x1xf32>
    %cst_47 = arith.constant 1.000000e-30 : f32
    %69 = vector.broadcast %cst_47 : f32 to vector<16x1xf32>
    %70 = arith.maximumf %68, %69 : vector<16x1xf32>
    %71 = tpu.reciprocal %70 {approx = true} : vector<16x1xf32> -> vector<16x1xf32>
    %72 = vector.broadcast %71 : vector<16x1xf32> to vector<16x16xf32>
    %73 = arith.mulf %66, %72 : vector<16x16xf32>
    %cst_48 = arith.constant dense<0.000000e+00> : vector<16x4xf32>
    %74 = tpu.matmul %73, %46, %cst_48 {dimension_numbers = #tpu.dot_dimension_numbers<[1], [0], [0], [1], [0, 0, 1, 1], [], []>} : vector<16x16xf32>, vector<16x4xf32>, vector<16x4xf32> -> vector<16x4xf32>
    %c0_49 = arith.constant 0 : index
    %c0_50 = arith.constant 0 : index
    %75 = vector.load %arg14[%c0_49, %c0_50] : memref<1x4xf32, #tpu.memory_space<vmem>>, vector<1x4xf32>
    %76 = vector.broadcast %75 : vector<1x4xf32> to vector<16x4xf32>
    %77 = arith.addf %74, %76 : vector<16x4xf32>
    %c0_51 = arith.constant 0 : index
    %c0_52 = arith.constant 0 : index
    %78 = vector.load %arg15[%c0_51, %c0_52] : memref<16x4xf32, #tpu.memory_space<vmem>>, vector<16x4xf32>
    tpu.vector_store %arg15[%c0_51, %c0_52], %77 {strides = array<i32>} : memref<16x4xf32, #tpu.memory_space<vmem>>, vector<16x4xf32>,
    return
  }
}

</mosaic_0001>

<llo_original>
// kernel: tile.14
$region0: #{tile.14}
  %s0 = inlined_call_operand.vmem [shape: f32[16,8,16], index: 0, kind: input, shape index: {}]
  %s1 = inlined_call_operand.vmem [shape: f32[16,128], index: 1, kind: output, shape index: {}]
  %v2 = vld [vmem:[%s0] ss:$8 sm:$0xf]
  %v3 = vld [vmem:[%s0] ss:$8 sm:$0xf0]
  %vm4 = vcmask 1047556
  %v5 = vsel %vm4, %v3, %v2
  %vm6 = vcmask 130048
  %7 = vst.msk [vmem:[%s1] sm:$0xff] %vm6, %v5
  %s8 = scalar_lea.vmem %s0, 64
  %v9 = vld [vmem:[%s8] ss:$8 sm:$0xf]
  %s10 = scalar_lea.vmem %s0, 64
  %v11 = vld [vmem:[%s10] ss:$8 sm:$0xf0]
  %vm12 = vcmask 1047556
  %v13 = vsel %vm12, %v11, %v9
  %vm14 = vcmask 130048
  %s15 = scalar_lea.vmem %s1, 8
  %16 = vst.msk [vmem:[%s15] sm:$0xff] %vm14, %v13
  %s17 = scalar_lea.vmem %s0, 7
  %v18 = vld [vmem:[%s17] ss:$8 sm:$0xf]
  %s19 = scalar_lea.vmem %s0, 7
  %v20 = vld [vmem:[%s19] ss:$8 sm:$0xf0]
  %vm21 = vcmask 1047556
  %v22 = vsel %vm21, %v20, %v18
  %23 = vrot.lane.b32.xlu0 %v22, 112
  %v24 = vpop.permute.xlu0 %23
  %vm25 = vcmask 1048448
  %26 = vst.msk [vmem:[%s1] sm:$0xff] %vm25, %v24
  %s27 = scalar_lea.vmem %s0, 71
  %v28 = vld [vmem:[%s27] ss:$8 sm:$0xf]
  %s29 = scalar_lea.vmem %s0, 71
  %v30 = vld [vmem:[%s29] ss:$8 sm:$0xf0]
  %vm31 = vcmask 1047556
  %v32 = vsel %vm31, %v30, %v28
  %33 = vrot.lane.b32.xlu0 %v32, 112
  %v34 = vpop.permute.xlu0 %33
  %vm35 = vcmask 1048448
  %s36 = scalar_lea.vmem %s1, 8
  %37 = vst.msk [vmem:[%s36] sm:$0xff] %vm35, %v34
  %s38 = scalar_lea.vmem %s0, 6
  %v39 = vld [vmem:[%s38] ss:$8 sm:$0xf]
  %s40 = scalar_lea.vmem %s0, 6
  %v41 = vld [vmem:[%s40] ss:$8 sm:$0xf0]
  %vm42 = vcmask 1047556
  %v43 = vsel %vm42, %v41, %v39
  %44 = vrot.lane.b32.xlu0 %v43, 96
  %v45 = vpop.permute.xlu0 %44
  %vm46 = vcmask 917248
  %47 = vst.msk [vmem:[%s1] sm:$0xff] %vm46, %v45
  %s48 = scalar_lea.vmem %s0, 70
  %v49 = vld [vmem:[%s48] ss:$8 sm:$0xf]
  %s50 = scalar_lea.vmem %s0, 70
  %v51 = vld [vmem:[%s50] ss:$8 sm:$0xf0]
  %vm52 = vcmask 1047556
  %v53 = vsel %vm52, %v51, %v49
  %54 = vrot.lane.b32.xlu0 %v53, 96
  %v55 = vpop.permute.xlu0 %54
  %vm56 = vcmask 917248
  %s57 = scalar_lea.vmem %s1, 8
  %58 = vst.msk [vmem:[%s57] sm:$0xff] %vm56, %v55
  %s59 = scalar_lea.vmem %s0, 5
  %v60 = vld [vmem:[%s59] ss:$8 sm:$0xf]
  %s61 = scalar_lea.vmem %s0, 5
  %v62 = vld [vmem:[%s61] ss:$8 sm:$0xf0]
  %vm63 = vcmask 1047556
  %v64 = vsel %vm63, %v62, %v60
  %65 = vrot.lane.b32.xlu0 %v64, 80
  %v66 = vpop.permute.xlu0 %65
  %vm67 = vcmask 786048
  %68 = vst.msk [vmem:[%s1] sm:$0xff] %vm67, %v66
  %s69 = scalar_lea.vmem %s0, 69
  %v70 = vld [vmem:[%s69] ss:$8 sm:$0xf]
  %s71 = scalar_lea.vmem %s0, 69
  %v72 = vld [vmem:[%s71] ss:$8 sm:$0xf0]
  %vm73 = vcmask 1047556
  %v74 = vsel %vm73, %v72, %v70
  %75 = vrot.lane.b32.xlu0 %v74, 80
  %v76 = vpop.permute.xlu0 %75
  %vm77 = vcmask 786048
  %s78 = scalar_lea.vmem %s1, 8
  %79 = vst.msk [vmem:[%s78] sm:$0xff] %vm77, %v76
  %s80 = scalar_lea.vmem %s0, 4
  %v81 = vld [vmem:[%s80] ss:$8 sm:$0xf]
  %s82 = scalar_lea.vmem %s0, 4
  %v83 = vld [vmem:[%s82] ss:$8 sm:$0xf0]
  %vm84 = vcmask 1047556
  %v85 = vsel %vm84, %v83, %v81
  %86 = vrot.lane.b32.xlu0 %v85, 64
  %v87 = vpop.permute.xlu0 %86
  %vm88 = vcmask 654848
  %89 = vst.msk [vmem:[%s1] sm:$0xff] %vm88, %v87
  %s90 = scalar_lea.vmem %s0, 68
  %v91 = vld [vmem:[%s90] ss:$8 sm:$0xf]
  %s92 = scalar_lea.vmem %s0, 68
  %v93 = vld [vmem:[%s92] ss:$8 sm:$0xf0]
  %vm94 = vcmask 1047556
  %v95 = vsel %vm94, %v93, %v91
  %96 = vrot.lane.b32.xlu0 %v95, 64
  %v97 = vpop.permute.xlu0 %96
  %vm98 = vcmask 654848
  %s99 = scalar_lea.vmem %s1, 8
  %100 = vst.msk [vmem:[%s99] sm:$0xff] %vm98, %v97
  %s101 = scalar_lea.vmem %s0, 3
  %v102 = vld [vmem:[%s101] ss:$8 sm:$0xf]
  %s103 = scalar_lea.vmem %s0, 3
  %v104 = vld [vmem:[%s103] ss:$8 sm:$0xf0]
  %vm105 = vcmask 1047556
  %v106 = vsel %vm105, %v104, %v102
  %107 = vrot.lane.b32.xlu0 %v106, 48
  %v108 = vpop.permute.xlu0 %107
  %vm109 = vcmask 523648
  %110 = vst.msk [vmem:[%s1] sm:$0xff] %vm109, %v108
  %s111 = scalar_lea.vmem %s0, 67
  %v112 = vld [vmem:[%s111] ss:$8 sm:$0xf]
  %s113 = scalar_lea.vmem %s0, 67
  %v114 = vld [vmem:[%s113] ss:$8 sm:$0xf0]
  %vm115 = vcmask 1047556
  %v116 = vsel %vm115, %v114, %v112
  %117 = vrot.lane.b32.xlu0 %v116, 48
  %v118 = vpop.permute.xlu0 %117
  %vm119 = vcmask 523648
  %s120 = scalar_lea.vmem %s1, 8
  %121 = vst.msk [vmem:[%s120] sm:$0xff] %vm119, %v118
  %s122 = scalar_lea.vmem %s0, 2
  %v123 = vld [vmem:[%s122] ss:$8 sm:$0xf]
  %s124 = scalar_lea.vmem %s0, 2
  %v125 = vld [vmem:[%s124] ss:$8 sm:$0xf0]
  %vm126 = vcmask 1047556
  %v127 = vsel %vm126, %v125, %v123
  %128 = vrot.lane.b32.xlu0 %v127, 32
  %v129 = vpop.permute.xlu0 %128
  %vm130 = vcmask 392448
  %131 = vst.msk [vmem:[%s1] sm:$0xff] %vm130, %v129
  %s132 = scalar_lea.vmem %s0, 66
  %v133 = vld [vmem:[%s132] ss:$8 sm:$0xf]
  %s134 = scalar_lea.vmem %s0, 66
  %v135 = vld [vmem:[%s134] ss:$8 sm:$0xf0]
  %vm136 = vcmask 1047556
  %v137 = vsel %vm136, %v135, %v133
  %138 = vrot.lane.b32.xlu0 %v137, 32
  %v139 = vpop.permute.xlu0 %138
  %vm140 = vcmask 392448
  %s141 = scalar_lea.vmem %s1, 8
  %142 = vst.msk [vmem:[%s141] sm:$0xff] %vm140, %v139
  %s143 = scalar_lea.vmem %s0, 1
  %v144 = vld [vmem:[%s143] ss:$8 sm:$0xf]
  %s145 = scalar_lea.vmem %s0, 1
  %v146 = vld [vmem:[%s145] ss:$8 sm:$0xf0]
  %vm147 = vcmask 1047556
  %v148 = vsel %vm147, %v146, %v144
  %149 = vrot.lane.b32.xlu0 %v148, 16
  %v150 = vpop.permute.xlu0 %149
  %vm151 = vcmask 261248
  %152 = vst.msk [vmem:[%s1] sm:$0xff] %vm151, %v150
  %s153 = scalar_lea.vmem %s0, 65
  %v154 = vld [vmem:[%s153] ss:$8 sm:$0xf]
  %s155 = scalar_lea.vmem %s0, 65
  %v156 = vld [vmem:[%s155] ss:$8 sm:$0xf0]
  %vm157 = vcmask 1047556
  %v158 = vsel %vm157, %v156, %v154
  %159 = vrot.lane.b32.xlu0 %v158, 16
  %v160 = vpop.permute.xlu0 %159
  %vm161 = vcmask 261248
  %s162 = scalar_lea.vmem %s1, 8
  %163 = vst.msk [vmem:[%s162] sm:$0xff] %vm161, %v160

// kernel: _lambda_.1
$region0: #{_lambda_.1}
  #allocation0 [shape = 'u32[]', space=smem, size = 0x4, offset = 0x4, fixed_abs, tag = 'smem constant byte address 0x4 - core index']
  #allocation1 [shape = 'u32[72,128]{1,0:T(1,128)}', space=vmem, size = 0x9000, scoped, tag = 'internal scratch']
  %s0 = inlined_call_operand.vmem [shape: f32[16,16], index: 0, kind: input, shape index: {}]
  %s1 = inlined_call_operand.vmem [shape: f32[16,128], index: 1, kind: input, shape index: {}]
  %s2 = inlined_call_operand.vmem [shape: f32[16,16], index: 2, kind: input, shape index: {}]
  %s3 = inlined_call_operand.vmem [shape: f32[16,64], index: 3, kind: input, shape index: {}]
  %s4 = inlined_call_operand.vmem [shape: f32[64,128], index: 4, kind: input, shape index: {}]
  %s5 = inlined_call_operand.vmem [shape: f32[64,128], index: 5, kind: input, shape index: {}]
  %s6 = inlined_call_operand.vmem [shape: f32[16,128], index: 6, kind: input, shape index: {}]
  %s7 = inlined_call_operand.vmem [shape: f32[128,8], index: 7, kind: input, shape index: {}]
  %s8 = inlined_call_operand.vmem [shape: f32[8,64], index: 8, kind: input, shape index: {}]
  %s9 = inlined_call_operand.vmem [shape: f32[128,64], index: 9, kind: input, shape index: {}]
  %s10 = inlined_call_operand.vmem [shape: f32[1,64], index: 10, kind: input, shape index: {}]
  %s11 = inlined_call_operand.vmem [shape: f32[64,4], index: 11, kind: input, shape index: {}]
  %s12 = inlined_call_operand.vmem [shape: f32[4,1], index: 12, kind: input, shape index: {}]
  %s13 = inlined_call_operand.vmem [shape: f32[4,1], index: 13, kind: input, shape index: {}]
  %s14 = inlined_call_operand.vmem [shape: f32[1,4], index: 14, kind: input, shape index: {}]
  %s15 = inlined_call_operand.vmem [shape: f32[16,4], index: 15, kind: output, shape index: {}]
  %s16 = sld [smem:[#allocation0]]
  $region70: #{_lambda_.1} parent=0
    _
  %s18 = ssub.s32 1, %s16
  %s19 = scalar_select 0, %s18, %s16
  // Predicated region
  $region2: #{_lambda_.1} parent=0 // pred_check
    _
  $region3: #{_lambda_.1} parent=0 // pred_check_branch
    %21 = sbr.rel (0) target = $region5
  $region4: #{_lambda_.1} parent=0 // pred_region
    _
  $region5: #{_lambda_.1} parent=0 // pred_fallthru
    _
  // Predicated region
  $region6: #{_lambda_.1} parent=0 // pred_check
    _
  $region7: #{_lambda_.1} parent=0 // pred_check_branch
    %23 = sbr.rel (0) target = $region9
  $region8: #{_lambda_.1} parent=0 // pred_region
    _
  $region9: #{_lambda_.1} parent=0 // pred_fallthru
    _
  // Predicated region
  $region10: #{_lambda_.1} parent=0 // pred_check
    _
  $region11: #{_lambda_.1} parent=0 // pred_check_branch
    %25 = sbr.rel (0) target = $region13
  $region12: #{_lambda_.1} parent=0 // pred_region
    _
  $region13: #{_lambda_.1} parent=0 // pred_fallthru
    _
  // Predicated region
  $region14: #{_lambda_.1} parent=0 // pred_check
    _
  $region15: #{_lambda_.1} parent=0 // pred_check_branch
    %27 = sbr.rel (0) target = $region17
  $region16: #{_lambda_.1} parent=0 // pred_region
    _
  $region17: #{_lambda_.1} parent=0 // pred_fallthru
    _
  // Predicated region
  $region18: #{_lambda_.1} parent=0 // pred_check
    _
  $region19: #{_lambda_.1} parent=0 // pred_check_branch
    %29 = sbr.rel (0) target = $region21
  $region20: #{_lambda_.1} parent=0 // pred_region
    _
  $region21: #{_lambda_.1} parent=0 // pred_fallthru
    _
  // Predicated region
  $region22: #{_lambda_.1} parent=0 // pred_check
    _
  $region23: #{_lambda_.1} parent=0 // pred_check_branch
    %31 = sbr.rel (0) target = $region25
  $region24: #{_lambda_.1} parent=0 // pred_region
    _
  $region25: #{_lambda_.1} parent=0 // pred_fallthru
    _
  // Predicated region
  $region26: #{_lambda_.1} parent=0 // pred_check
    _
  $region27: #{_lambda_.1} parent=0 // pred_check_branch
    %33 = sbr.rel (0) target = $region29
  $region28: #{_lambda_.1} parent=0 // pred_region
    _
  $region29: #{_lambda_.1} parent=0 // pred_fallthru
    _
  // Predicated region
  $region30: #{_lambda_.1} parent=0 // pred_check
    _
  $region31: #{_lambda_.1} parent=0 // pred_check_branch
    %35 = sbr.rel (0) target = $region33
  $region32: #{_lambda_.1} parent=0 // pred_region
    _
  $region33: #{_lambda_.1} parent=0 // pred_fallthru
    _
  // Predicated region
  $region34: #{_lambda_.1} parent=0 // pred_check
    _
  $region35: #{_lambda_.1} parent=0 // pred_check_branch
    %37 = sbr.rel (0) target = $region37
  $region36: #{_lambda_.1} parent=0 // pred_region
    _
  $region37: #{_lambda_.1} parent=0 // pred_fallthru
    _
  // Predicated region
  $region38: #{_lambda_.1} parent=0 // pred_check
    _
  $region39: #{_lambda_.1} parent=0 // pred_check_branch
    %39 = sbr.rel (0) target = $region41
  $region40: #{_lambda_.1} parent=0 // pred_region
    _
  $region41: #{_lambda_.1} parent=0 // pred_fallthru
    _
  // Predicated region
  $region42: #{_lambda_.1} parent=0 // pred_check
    _
  $region43: #{_lambda_.1} parent=0 // pred_check_branch
    %41 = sbr.rel (0) target = $region45
  $region44: #{_lambda_.1} parent=0 // pred_region
    _
  $region45: #{_lambda_.1} parent=0 // pred_fallthru
    _
  // Predicated region
  $region46: #{_lambda_.1} parent=0 // pred_check
    _
  $region47: #{_lambda_.1} parent=0 // pred_check_branch
    %43 = sbr.rel (0) target = $region49
  $region48: #{_lambda_.1} parent=0 // pred_region
    _
  $region49: #{_lambda_.1} parent=0 // pred_fallthru
    _
  // Predicated region
  $region50: #{_lambda_.1} parent=0 // pred_check
    _
  $region51: #{_lambda_.1} parent=0 // pred_check_branch
    %45 = sbr.rel (0) target = $region53
  $region52: #{_lambda_.1} parent=0 // pred_region
    _
  $region53: #{_lambda_.1} parent=0 // pred_fallthru
    _
  // Predicated region
  $region54: #{_lambda_.1} parent=0 // pred_check
    _
  $region55: #{_lambda_.1} parent=0 // pred_check_branch
    %47 = sbr.rel (0) target = $region57
  $region56: #{_lambda_.1} parent=0 // pred_region
    _
  $region57: #{_lambda_.1} parent=0 // pred_fallthru
    _
  // Predicated region
  $region58: #{_lambda_.1} parent=0 // pred_check
    _
  $region59: #{_lambda_.1} parent=0 // pred_check_branch
    %49 = sbr.rel (0) target = $region61
  $region60: #{_lambda_.1} parent=0 // pred_region
    _
  $region61: #{_lambda_.1} parent=0 // pred_fallthru
    _
  %v50 = vld [vmem:[%s0] sm:$0xff]
  %v51 = vld [vmem:[%s0 + $0x8] sm:$0xff]
  %v52 = vld [vmem:[%s3] sm:$0xff]
  %v53 = vld [vmem:[%s3 + $0x8] sm:$0xff]
  %vm54 = vcmask 130048
  %v56 = vsel %vm54, %v50, 0
  %v59 = vsel %vm54, %v51, 0
  %61 = vmatpush.msra.mxu0 0.0
  %62 = vmatpush.msra.mxu0 0.0
  %63 = vmatpush.msra.mxu0 0.0
  %64 = vmatpush.msra.mxu0 0.0
  %65 = vmatpush.msra.mxu0 0.0
  %66 = vmatpush.msra.mxu0 0.0
  %67 = vmatpush.msra.mxu0 0.0
  %68 = vmatpush.msra.mxu0 0.0
  %69 = vmatpush.msra.mxu0 0.0
  %70 = vmatpush.msra.mxu0 0.0
  %71 = vmatpush.msra.mxu0 0.0
  %72 = vmatpush.msra.mxu0 0.0
  %73 = vmatpush.msra.mxu0 0.0
  %74 = vmatpush.msra.mxu0 0.0
  %75 = vmatpush.msra.mxu0 %v53
  %76 = vmatpush.msra.mxu0 %v52
  %77 = vmatmul.f32.gmra.mxu0 %v56
  %v78 = vpop.f32.mrf.mxu0
  %v79 = vadd.f32 0.0, %v78
  %80 = vmatmul.f32.gmra.mxu0 %v59
  %v81 = vpop.f32.mrf.mxu0
  %v82 = vadd.f32 0.0, %v81
  %83 = vdwg.mxu0
  %v84 = vld [vmem:[%s5] sm:$0xff]
  %v85 = vld [vmem:[%s5 + $0x8] sm:$0xff]
  %v86 = vld [vmem:[%s5 + $0x10] sm:$0xff]
  %v87 = vld [vmem:[%s5 + $0x18] sm:$0xff]
  %v88 = vld [vmem:[%s5 + $0x20] sm:$0xff]
  %v89 = vld [vmem:[%s5 + $0x28] sm:$0xff]
  %v90 = vld [vmem:[%s5 + $0x30] sm:$0xff]
  %v91 = vld [vmem:[%s5 + $0x38] sm:$0xff]
  %v92 = vld [vmem:[%s4] sm:$0xff]
  %v93 = vld [vmem:[%s4 + $0x8] sm:$0xff]
  %v94 = vld [vmem:[%s4 + $0x10] sm:$0xff]
  %v95 = vld [vmem:[%s4 + $0x18] sm:$0xff]
  %v96 = vld [vmem:[%s4 + $0x20] sm:$0xff]
  %v97 = vld [vmem:[%s4 + $0x28] sm:$0xff]
  %v98 = vld [vmem:[%s4 + $0x30] sm:$0xff]
  %v99 = vld [vmem:[%s4 + $0x38] sm:$0xff]
  %vm100 = vcmask 523264
  %v102 = vsel %vm100, %v79, 0
  %v105 = vsel %vm100, %v82, 0
  %107 = vmatpush.msra.mxu0 0.0
  %108 = vmatpush.msra.mxu0 0.0
  %109 = vmatpush.msra.mxu0 0.0
  %110 = vmatpush.msra.mxu0 0.0
  %111 = vmatpush.msra.mxu0 0.0
  %112 = vmatpush.msra.mxu0 0.0
  %113 = vmatpush.msra.mxu0 0.0
  %114 = vmatpush.msra.mxu0 0.0
  %115 = vmatpush.msra.mxu0 %v99
  %116 = vmatpush.msra.mxu0 %v98
  %117 = vmatpush.msra.mxu0 %v97
  %118 = vmatpush.msra.mxu0 %v96
  %119 = vmatpush.msra.mxu0 %v95
  %120 = vmatpush.msra.mxu0 %v94
  %121 = vmatpush.msra.mxu0 %v93
  %122 = vmatpush.msra.mxu0 %v92
  %123 = vmatmul.f32.gmra.mxu0 %v102
  %v124 = vpop.f32.mrf.mxu0
  %v125 = vadd.f32 0.0, %v124
  %126 = vmatmul.f32.gmra.mxu0 %v105
  %v127 = vpop.f32.mrf.mxu0
  %v128 = vadd.f32 0.0, %v127
  %129 = vdwg.mxu0
  %v130 = vld [vmem:[%s6] sm:$0xff]
  %v131 = vld [vmem:[%s6 + $0x8] sm:$0xff]
  %v132 = vmul.f32 %v125, %v130
  %v133 = vmul.f32 %v128, %v131
  %v135 = vsel %vm54, 1.0, 0
  %137 = vmatpush.msra.mxu0 0.0
  %138 = vmatpush.msra.mxu0 0.0
  %139 = vmatpush.msra.mxu0 0.0
  %140 = vmatpush.msra.mxu0 0.0
  %141 = vmatpush.msra.mxu0 0.0
  %142 = vmatpush.msra.mxu0 0.0
  %143 = vmatpush.msra.mxu0 0.0
  %144 = vmatpush.msra.mxu0 0.0
  %145 = vmatpush.msra.mxu0 0.0
  %146 = vmatpush.msra.mxu0 0.0
  %147 = vmatpush.msra.mxu0 0.0
  %148 = vmatpush.msra.mxu0 0.0
  %149 = vmatpush.msra.mxu0 0.0
  %150 = vmatpush.msra.mxu0 0.0
  %151 = vmatpush.msra.mxu0 %v133
  %152 = vmatpush.msra.mxu0 %v132
  %153 = vmatmul.f32.gmra.mxu0 %v135
  %v154 = vpop.f32.mrf.mxu0
  %v155 = vadd.f32 0.0, %v154
  %156 = vmatmul.f32.gmra.mxu0 %v135
  %v157 = vpop.f32.mrf.mxu0
  %v158 = vadd.f32 0.0, %v157
  %159 = vdwg.mxu0
  %160 = vmatpush.msra.mxu0 0.0
  %161 = vmatpush.msra.mxu0 0.0
  %162 = vmatpush.msra.mxu0 0.0
  %163 = vmatpush.msra.mxu0 0.0
  %164 = vmatpush.msra.mxu0 0.0
  %165 = vmatpush.msra.mxu0 0.0
  %166 = vmatpush.msra.mxu0 0.0
  %167 = vmatpush.msra.mxu0 0.0
  %168 = vmatpush.msra.mxu0 %v91
  %169 = vmatpush.msra.mxu0 %v90
  %170 = vmatpush.msra.mxu0 %v89
  %171 = vmatpush.msra.mxu0 %v88
  %172 = vmatpush.msra.mxu0 %v87
  %173 = vmatpush.msra.mxu0 %v86
  %174 = vmatpush.msra.mxu0 %v85
  %175 = vmatpush.msra.mxu0 %v84
  %176 = vmatmul.f32.gmra.mxu0 %v102
  %v177 = vpop.f32.mrf.mxu0
  %v178 = vadd.f32 %v155, %v177
  %179 = vmatmul.f32.gmra.mxu0 %v105
  %v180 = vpop.f32.mrf.mxu0
  %v181 = vadd.f32 %v158, %v180
  %182 = vdwg.mxu0
  %vm183 = vcmp.gt.f32.partialorder %v178, 0.0
  %vm184 = vcmp.gt.f32.partialorder %v181, 0.0
  %v185 = vmul.f32 %v178, 0.2
  %v186 = vmul.f32 %v181, 0.2
  %v187 = vsel %vm183, %v178, %v185
  %v188 = vsel %vm184, %v181, %v186
  %v189 = vld [vmem:[%s1] sm:$0xff]
  %v190 = vld [vmem:[%s1 + $0x8] sm:$0xff]
  %v191 = vadd.f32 %v187, %v189
  %v192 = vadd.f32 %v188, %v190
  %193 = vmax.xlane.f32.xlu0 %v191
  %v194 = vpop.xlane.xlu0 %193
  %195 = vmax.xlane.f32.xlu0 %v192
  %v196 = vpop.xlane.xlu0 %195
  %v197 = vsub.f32 %v191, %v194
  %v198 = vsub.f32 %v192, %v196
  %v199 = vmul.f32 %v197, 1.442695
  %v200 = vpow.pop %v199
  %v201 = vmul.f32 %v198, 1.442695
  %v202 = vpow.pop %v201
  %v203 = vld [vmem:[%s7] sm:$0xff]
  %v204 = vld [vmem:[%s7 + $0x8] sm:$0xff]
  %v205 = vld [vmem:[%s7 + $0x10] sm:$0xff]
  %v206 = vld [vmem:[%s7 + $0x18] sm:$0xff]
  %v207 = vld [vmem:[%s7 + $0x20] sm:$0xff]
  %v208 = vld [vmem:[%s7 + $0x28] sm:$0xff]
  %v209 = vld [vmem:[%s7 + $0x30] sm:$0xff]
  %v210 = vld [vmem:[%s7 + $0x38] sm:$0xff]
  %v211 = vld [vmem:[%s7 + $0x40] sm:$0xff]
  %v212 = vld [vmem:[%s7 + $0x48] sm:$0xff]
  %v213 = vld [vmem:[%s7 + $0x50] sm:$0xff]
  %v214 = vld [vmem:[%s7 + $0x58] sm:$0xff]
  %v215 = vld [vmem:[%s7 + $0x60] sm:$0xff]
  %v216 = vld [vmem:[%s7 + $0x68] sm:$0xff]
  %v217 = vld [vmem:[%s7 + $0x70] sm:$0xff]
  %v218 = vld [vmem:[%s7 + $0x78] sm:$0xff]
  %219 = vmatpush.msra.mxu0 %v218
  %220 = vmatpush.msra.mxu0 %v217
  %221 = vmatpush.msra.mxu0 %v216
  %222 = vmatpush.msra.mxu0 %v215
  %223 = vmatpush.msra.mxu0 %v214
  %224 = vmatpush.msra.mxu0 %v213
  %225 = vmatpush.msra.mxu0 %v212
  %226 = vmatpush.msra.mxu0 %v211
  %227 = vmatpush.msra.mxu0 %v210
  %228 = vmatpush.msra.mxu0 %v209
  %229 = vmatpush.msra.mxu0 %v208
  %230 = vmatpush.msra.mxu0 %v207
  %231 = vmatpush.msra.mxu0 %v206
  %232 = vmatpush.msra.mxu0 %v205
  %233 = vmatpush.msra.mxu0 %v204
  %234 = vmatpush.msra.mxu0 %v203
  %235 = vmatmul.f32.gmra.mxu0 %v200
  %v236 = vpop.f32.mrf.mxu0
  %v237 = vadd.f32 0.0, %v236
  %238 = vmatmul.f32.gmra.mxu0 %v202
  %v239 = vpop.f32.mrf.mxu0
  %v240 = vadd.f32 0.0, %v239
  %241 = vdwg.mxu0
  %v242 = vmax.f32 %v237, 1e-30
  %v243 = vmax.f32 %v240, 1e-30
  %v244 = vrcp.pop %v242
  %v245 = vrcp.pop %v243
  %v246 = vld [vmem:[%s8] sm:$0xff]
  %vm247 = vcmask 64512
  %v249 = vsel %vm247, %v244, 0
  %v252 = vsel %vm247, %v245, 0
  %254 = vmatpush.msra.mxu0 0.0
  %255 = vmatpush.msra.mxu0 0.0
  %256 = vmatpush.msra.mxu0 0.0
  %257 = vmatpush.msra.mxu0 0.0
  %258 = vmatpush.msra.mxu0 0.0
  %259 = vmatpush.msra.mxu0 0.0
  %260 = vmatpush.msra.mxu0 0.0
  %261 = vmatpush.msra.mxu0 0.0
  %262 = vmatpush.msra.mxu0 0.0
  %263 = vmatpush.msra.mxu0 0.0
  %264 = vmatpush.msra.mxu0 0.0
  %265 = vmatpush.msra.mxu0 0.0
  %266 = vmatpush.msra.mxu0 0.0
  %267 = vmatpush.msra.mxu0 0.0
  %268 = vmatpush.msra.mxu0 0.0
  %269 = vmatpush.msra.mxu0 %v246
  %270 = vmatmul.f32.gmra.mxu0 %v249
  %v271 = vpop.f32.mrf.mxu0
  %v272 = vadd.f32 0.0, %v271
  %273 = vmatmul.f32.gmra.mxu0 %v252
  %v274 = vpop.f32.mrf.mxu0
  %v275 = vadd.f32 0.0, %v274
  %276 = vdwg.mxu0
  %v277 = vld [vmem:[%s9] sm:$0xff]
  %v278 = vld [vmem:[%s9 + $0x8] sm:$0xff]
  %v279 = vld [vmem:[%s9 + $0x10] sm:$0xff]
  %v280 = vld [vmem:[%s9 + $0x18] sm:$0xff]
  %v281 = vld [vmem:[%s9 + $0x20] sm:$0xff]
  %v282 = vld [vmem:[%s9 + $0x28] sm:$0xff]
  %v283 = vld [vmem:[%s9 + $0x30] sm:$0xff]
  %v284 = vld [vmem:[%s9 + $0x38] sm:$0xff]
  %v285 = vld [vmem:[%s9 + $0x40] sm:$0xff]
  %v286 = vld [vmem:[%s9 + $0x48] sm:$0xff]
  %v287 = vld [vmem:[%s9 + $0x50] sm:$0xff]
  %v288 = vld [vmem:[%s9 + $0x58] sm:$0xff]
  %v289 = vld [vmem:[%s9 + $0x60] sm:$0xff]
  %v290 = vld [vmem:[%s9 + $0x68] sm:$0xff]
  %v291 = vld [vmem:[%s9 + $0x70] sm:$0xff]
  %v292 = vld [vmem:[%s9 + $0x78] sm:$0xff]
  %v293 = vmul.f32 %v79, %v277
  %v294 = vmul.f32 %v82, %v278
  %v295 = vmul.f32 %v79, %v279
  %v296 = vmul.f32 %v82, %v280
  %v297 = vmul.f32 %v79, %v281
  %v298 = vmul.f32 %v82, %v282
  %v299 = vmul.f32 %v79, %v283
  %v300 = vmul.f32 %v82, %v284
  %v301 = vmul.f32 %v79, %v285
  %v302 = vmul.f32 %v82, %v286
  %v303 = vmul.f32 %v79, %v287
  %v304 = vmul.f32 %v82, %v288
  %v305 = vmul.f32 %v79, %v289
  %v306 = vmul.f32 %v82, %v290
  %v307 = vmul.f32 %v79, %v291
  %v308 = vmul.f32 %v82, %v292
  %309 = vmatpush.msra.mxu0 %v308
  %310 = vmatpush.msra.mxu0 %v307
  %311 = vmatpush.msra.mxu0 %v306
  %312 = vmatpush.msra.mxu0 %v305
  %313 = vmatpush.msra.mxu0 %v304
  %314 = vmatpush.msra.mxu0 %v303
  %315 = vmatpush.msra.mxu0 %v302
  %316 = vmatpush.msra.mxu0 %v301
  %317 = vmatpush.msra.mxu0 %v300
  %318 = vmatpush.msra.mxu0 %v299
  %319 = vmatpush.msra.mxu0 %v298
  %320 = vmatpush.msra.mxu0 %v297
  %321 = vmatpush.msra.mxu0 %v296
  %322 = vmatpush.msra.mxu0 %v295
  %323 = vmatpush.msra.mxu0 %v294
  %324 = vmatpush.msra.mxu0 %v293
  %325 = vmatmul.f32.gmra.mxu0 %v200
  %v326 = vpop.f32.mrf.mxu0
  %v327 = vadd.f32 0.0, %v326
  %328 = vmatmul.f32.gmra.mxu0 %v202
  %v329 = vpop.f32.mrf.mxu0
  %v330 = vadd.f32 0.0, %v329
  %331 = vdwg.mxu0
  %v332 = vmul.f32 %v327, %v272
  %v333 = vmul.f32 %v330, %v275
  %v334 = vld [vmem:[%s10] sm:$0x1]
  %v336 = vperm.slane %v334, 0
  %v338 = vadd.f32 %v332, %v336
  %v339 = vadd.f32 %v333, %v336
  %vm340 = vcmp.gt.f32.partialorder %v338, 0.0
  %vm341 = vcmp.gt.f32.partialorder %v339, 0.0
  %v342 = vmul.f32 %v338, 1.442695
  %v343 = vpow.pop %v342
  %v344 = vmul.f32 %v339, 1.442695
  %v345 = vpow.pop %v344
  %v346 = vsub.f32 %v343, 1.0
  %v347 = vsub.f32 %v345, 1.0
  %v348 = vsel %vm340, %v338, %v346
  %v349 = vsel %vm341, %v339, %v347
  %v350 = vld [vmem:[%s11] sm:$0xff]
  %v351 = vld [vmem:[%s11 + $0x8] sm:$0xff]
  %v352 = vld [vmem:[%s11 + $0x10] sm:$0xff]
  %v353 = vld [vmem:[%s11 + $0x18] sm:$0xff]
  %v354 = vld [vmem:[%s11 + $0x20] sm:$0xff]
  %v355 = vld [vmem:[%s11 + $0x28] sm:$0xff]
  %v356 = vld [vmem:[%s11 + $0x30] sm:$0xff]
  %v357 = vld [vmem:[%s11 + $0x38] sm:$0xff]
  %v359 = vsel %vm100, %v348, 0
  %v362 = vsel %vm100, %v349, 0
  %364 = vmatpush.msra.mxu0 0.0
  %365 = vmatpush.msra.mxu0 0.0
  %366 = vmatpush.msra.mxu0 0.0
  %367 = vmatpush.msra.mxu0 0.0
  %368 = vmatpush.msra.mxu0 0.0
  %369 = vmatpush.msra.mxu0 0.0
  %370 = vmatpush.msra.mxu0 0.0
  %371 = vmatpush.msra.mxu0 0.0
  %372 = vmatpush.msra.mxu0 %v357
  %373 = vmatpush.msra.mxu0 %v356
  %374 = vmatpush.msra.mxu0 %v355
  %375 = vmatpush.msra.mxu0 %v354
  %376 = vmatpush.msra.mxu0 %v353
  %377 = vmatpush.msra.mxu0 %v352
  %378 = vmatpush.msra.mxu0 %v351
  %379 = vmatpush.msra.mxu0 %v350
  %380 = vmatmul.f32.gmra.mxu0 %v359
  %v381 = vpop.f32.mrf.mxu0
  %v382 = vadd.f32 0.0, %v381
  %383 = vmatmul.f32.gmra.mxu0 %v362
  %v384 = vpop.f32.mrf.mxu0
  %v385 = vadd.f32 0.0, %v384
  %386 = vdwg.mxu0
  %v387 = vld [vmem:[%s12] sm:$0xf]
  %vm388 = vcmask 31744
  %v390 = vsel %vm388, %v382, 0
  %v393 = vsel %vm388, %v385, 0
  %vm395 = vcmask 1043456
  %v397 = vsel %vm395, %v387, 0
  %399 = vmatpush.msra.mxu0 0.0
  %400 = vmatpush.msra.mxu0 0.0
  %401 = vmatpush.msra.mxu0 0.0
  %402 = vmatpush.msra.mxu0 0.0
  %403 = vmatpush.msra.mxu0 0.0
  %404 = vmatpush.msra.mxu0 0.0
  %405 = vmatpush.msra.mxu0 0.0
  %406 = vmatpush.msra.mxu0 0.0
  %407 = vmatpush.msra.mxu0 0.0
  %408 = vmatpush.msra.mxu0 0.0
  %409 = vmatpush.msra.mxu0 0.0
  %410 = vmatpush.msra.mxu0 0.0
  %411 = vmatpush.msra.mxu0 0.0
  %412 = vmatpush.msra.mxu0 0.0
  %413 = vmatpush.msra.mxu0 0.0
  %414 = vmatpush.msra.mxu0 %v397
  %415 = vmatmul.f32.gmra.mxu0 %v390
  %v416 = vpop.f32.mrf.mxu0
  %v417 = vadd.f32 0.0, %v416
  %418 = vmatmul.f32.gmra.mxu0 %v393
  %v419 = vpop.f32.mrf.mxu0
  %v420 = vadd.f32 0.0, %v419
  %421 = vdwg.mxu0
  %v422 = vld [vmem:[%s13] sm:$0xf]
  %v424 = vsel %vm395, %v422, 0
  %426 = vmatpush.msra.mxu0 0.0
  %427 = vmatpush.msra.mxu0 0.0
  %428 = vmatpush.msra.mxu0 0.0
  %429 = vmatpush.msra.mxu0 0.0
  %430 = vmatpush.msra.mxu0 0.0
  %431 = vmatpush.msra.mxu0 0.0
  %432 = vmatpush.msra.mxu0 0.0
  %433 = vmatpush.msra.mxu0 0.0
  %434 = vmatpush.msra.mxu0 0.0
  %435 = vmatpush.msra.mxu0 0.0
  %436 = vmatpush.msra.mxu0 0.0
  %437 = vmatpush.msra.mxu0 0.0
  %438 = vmatpush.msra.mxu0 0.0
  %439 = vmatpush.msra.mxu0 0.0
  %440 = vmatpush.msra.mxu0 0.0
  %441 = vmatpush.msra.mxu0 %v424
  %442 = vmatmul.f32.gmra.mxu0 %v390
  %v443 = vpop.f32.mrf.mxu0
  %v444 = vadd.f32 0.0, %v443
  %445 = vmatmul.f32.gmra.mxu0 %v393
  %v446 = vpop.f32.mrf.mxu0
  %v447 = vadd.f32 0.0, %v446
  %448 = vdwg.mxu0
  %449 = vxpose.xlu0.b32.start [1/16] %v417, 128
  %450 = vxpose.xlu0.b32.cont [2/16] %v420, 128
  %451 = vxpose.xlu0.b32.cont [3/16] 0.0, 128
  %452 = vxpose.xlu0.b32.cont [4/16] 0.0, 128
  %453 = vxpose.xlu0.b32.cont [5/16] 0.0, 128
  %454 = vxpose.xlu0.b32.cont [6/16] 0.0, 128
  %455 = vxpose.xlu0.b32.cont [7/16] 0.0, 128
  %456 = vxpose.xlu0.b32.cont [8/16] 0.0, 128
  %457 = vxpose.xlu0.b32.cont [9/16] 0.0, 128
  %458 = vxpose.xlu0.b32.cont [10/16] 0.0, 128
  %459 = vxpose.xlu0.b32.cont [11/16] 0.0, 128
  %460 = vxpose.xlu0.b32.cont [12/16] 0.0, 128
  %461 = vxpose.xlu0.b32.cont [13/16] 0.0, 128
  %462 = vxpose.xlu0.b32.cont [14/16] 0.0, 128
  %463 = vxpose.xlu0.b32.cont [15/16] 0.0, 128
  %464 = vxpose.xlu0.b32.end [16/16] 0.0, 128
  %v465 = vpop.trf.xlu0
  %v466 = vpop.trf.xlu0
  %v467 = vpop.trf.xlu0
  %v468 = vpop.trf.xlu0
  %v469 = vpop.trf.xlu0
  %v470 = vpop.trf.xlu0
  %v471 = vpop.trf.xlu0
  %v472 = vpop.trf.xlu0
  %v473 = vpop.trf.xlu0
  %v474 = vpop.trf.xlu0
  %v475 = vpop.trf.xlu0
  %v476 = vpop.trf.xlu0
  %v477 = vpop.trf.xlu0
  %v478 = vpop.trf.xlu0
  %v479 = vpop.trf.xlu0
  %v480 = vpop.trf.xlu0
  %482 = vset.pattern.permute.xlu0 0
  %483 = vperm.xlu0 %482, %v444
  %v484 = vpop.permute.xlu0 %483
  %487 = vset.pattern.permute.xlu0 0
  %488 = vperm.xlu0 %487, %v447
  %v489 = vpop.permute.xlu0 %488
  %v491 = vperm.slane %v465, 0
  %v492 = vadd.f32 %v484, %v491
  %v493 = vadd.f32 %v489, %v491
  %vm494 = vcmp.gt.f32.partialorder %v492, 0.0
  %vm495 = vcmp.gt.f32.partialorder %v493, 0.0
  %v496 = vmul.f32 %v492, 0.2
  %v497 = vmul.f32 %v493, 0.2
  %v498 = vsel %vm494, %v492, %v496
  %v499 = vsel %vm495, %v493, %v497
  %v500 = vld [vmem:[%s2] sm:$0xff]
  %v501 = vld [vmem:[%s2 + $0x8] sm:$0xff]
  %v502 = vadd.f32 %v498, %v500
  %v503 = vadd.f32 %v499, %v501
  %v504 = vsel %vm54, %v502, -inf
  %505 = vmax.xlane.f32.xlu0 %v504
  %v506 = vpop.xlane.xlu0 %505
  %v507 = vsel %vm54, %v503, -inf
  %508 = vmax.xlane.f32.xlu0 %v507
  %v509 = vpop.xlane.xlu0 %508
  %v510 = vsub.f32 %v502, %v506
  %v511 = vsub.f32 %v503, %v509
  %v512 = vmul.f32 %v510, 1.442695
  %v513 = vpow.pop %v512
  %v514 = vmul.f32 %v511, 1.442695
  %v515 = vpow.pop %v514
  %v516 = vsel %vm54, %v513, 0.0
  %517 = vadd.xlane.f32.xlu0 %v516
  %v518 = vpop.xlane.xlu0 %517
  %v519 = vsel %vm54, %v515, 0.0
  %520 = vadd.xlane.f32.xlu0 %v519
  %v521 = vpop.xlane.xlu0 %520
  %v522 = vmax.f32 %v518, 1e-30
  %v523 = vmax.f32 %v521, 1e-30
  %v524 = vrcp.pop %v522
  %v525 = vrcp.pop %v523
  %v526 = vmul.f32 %v513, %v524
  %v527 = vmul.f32 %v515, %v525
  %v528 = vld [vmem:[%s14] sm:$0x1]
  %v530 = vperm.slane %v528, 0
  %v533 = vsel %vm54, %v526, 0
  %v536 = vsel %vm54, %v527, 0
  %538 = vmatpush.msra.mxu0 0.0
  %539 = vmatpush.msra.mxu0 0.0
  %540 = vmatpush.msra.mxu0 0.0
  %541 = vmatpush.msra.mxu0 0.0
  %542 = vmatpush.msra.mxu0 0.0
  %543 = vmatpush.msra.mxu0 0.0
  %544 = vmatpush.msra.mxu0 0.0
  %545 = vmatpush.msra.mxu0 0.0
  %546 = vmatpush.msra.mxu0 0.0
  %547 = vmatpush.msra.mxu0 0.0
  %548 = vmatpush.msra.mxu0 0.0
  %549 = vmatpush.msra.mxu0 0.0
  %550 = vmatpush.msra.mxu0 0.0
  %551 = vmatpush.msra.mxu0 0.0
  %552 = vmatpush.msra.mxu0 %v385
  %553 = vmatpush.msra.mxu0 %v382
  %554 = vmatmul.f32.gmra.mxu0 %v533
  %v555 = vpop.f32.mrf.mxu0
  %v556 = vadd.f32 %v530, %v555
  %557 = vmatmul.f32.gmra.mxu0 %v536
  %v558 = vpop.f32.mrf.mxu0
  %v559 = vadd.f32 %v530, %v558
  %560 = vdwg.mxu0
  %561 = vst.msk [vmem:[%s15] sm:$0xff] %vm388, %v556
  %562 = vst.msk [vmem:[%s15 + $0x8] sm:$0xff] %vm388, %v559
  // Predicated region
  $region62: #{_lambda_.1} parent=0 // pred_check
    _
  $region63: #{_lambda_.1} parent=0 // pred_check_branch
    %564 = sbr.rel (0) target = $region65
  $region64: #{_lambda_.1} parent=0 // pred_region
    _
  $region65: #{_lambda_.1} parent=0 // pred_fallthru
    _
  // Predicated region
  $region66: #{_lambda_.1} parent=0 // pred_check
    _
  $region67: #{_lambda_.1} parent=0 // pred_check_branch
    %566 = sbr.rel (0) target = $region69
  $region68: #{_lambda_.1} parent=0 // pred_region
    _
  $region69: #{_lambda_.1} parent=0 // pred_fallthru
    _

</llo_original>
